<compile_context>
chip_gen: v6e
topology: v6e:2x2x1
jax: 0.10.0
libtpu: 0.0.40
codegen_flags: <defaults>
</compile_context>

<pallas_src>
import jax
import jax.numpy as jnp
from jax.experimental import pallas as pl
from jax.experimental.pallas import tpu as pltpu

LANE = 128      # vreg lane width (last dim)
SUBLANE = 8     # f32 sublane quantum (second-to-last dim)


def _copy_kernel(x_ref, o_ref):
    # Whole forward of Net is `return x`; the hot path is a VMEM tile copy.
    o_ref[...] = x_ref[...]


def _pick_tile(extent: int, max_tile: int, quantum: int) -> int:
    """Full extent if it fits (exempt from the (8,128) rule), else a multiple of quantum."""
    if extent <= max_tile:
        return extent
    return max((max_tile // quantum) * quantum, quantum)


@jax.jit
def net_forward(x: jax.Array) -> jax.Array:
    """Pallas implementation of Net.forward (identity).

    Note: Net._initialization references self.layermodules(), which defines no
    layers reachable from forward; the forward pass has no parameters.
    """
    orig_shape = x.shape
    n = x.size

    # Build a lane-dense 2D view: last dim a multiple of 128 whenever possible.
    if n % LANE == 0:
        cols = LANE
        while cols < 2048 and n % (cols * 2) == 0 and (n // (cols * 2)) >= SUBLANE:
            cols *= 2
    else:
        cols = orig_shape[-1]  # fallback for odd sizes (still correct, just masked stores)
    rows = n // cols
    x2d = x.reshape(rows, cols)

    # Tile sizes: small enough to fit v7x's 64 MiB VMEM with double-buffered
    # in+out (<= ~2 MiB per buffer), big enough to amortize per-step overhead.
    tm = _pick_tile(rows, 1024, SUBLANE)
    tn = _pick_tile(cols, 512, LANE)
    grid = (pl.cdiv(rows, tm), pl.cdiv(cols, tn))

    out2d = pl.pallas_call(
        _copy_kernel,
        out_shape=jax.ShapeDtypeStruct((rows, cols), x.dtype),
        grid=grid,
        in_specs=[pl.BlockSpec((tm, tn), lambda i, j: (i, j))],
        out_specs=pl.BlockSpec((tm, tn), lambda i, j: (i, j)),
        input_output_aliases={0: 0},  # output aliases input: no extra HBM buffer
        compiler_params=pltpu.CompilerParams(
            dimension_semantics=("parallel", "parallel"),
        ),
    )(x2d)

    return out2d.reshape(orig_shape)


if __name__ == "__main__":
    key = jax.random.PRNGKey(0)
    # NCHW input, small shapes: batch=2, channels=4, spatial=16x16.
    x = jax.random.normal(key, (2, 4, 16, 16), dtype=jnp.float32)

    y = net_forward(x)
    y = jax.block_until_ready(y)

    assert y.shape == x.shape and y.dtype == x.dtype
    assert bool(jnp.allclose(y, x)), "identity forward mismatch"

    print("KERNEL_OK")
</pallas_src>

<mosaic_0001>
module attributes {stable_mosaic.version = 11 : i64} {
  func.func @_copy_kernel(%arg0: i32, %arg1: i32, %arg2: memref<8x256xf32, #tpu.memory_space<vmem>>, %arg3: memref<8x256xf32, #tpu.memory_space<vmem>>) attributes {dimension_semantics = [#tpu.dimension_semantics<parallel>, #tpu.dimension_semantics<parallel>], iteration_bounds = array<i64: 1, 1>, scalar_prefetch = 0 : i64, scratch_operands = 0 : i64, tpu.core_type = #tpu.core_type<tc>, window_params = [{transform_indices = @transform_0, window_bounds = array<i64: 8, 256>}, {transform_indices = @transform_1, window_bounds = array<i64: 8, 256>}]} {
    %c0 = arith.constant 0 : index
    %c0_0 = arith.constant 0 : index
    %0 = vector.load %arg2[%c0, %c0_0] : memref<8x256xf32, #tpu.memory_space<vmem>>, vector<8x256xf32>
    %c0_1 = arith.constant 0 : index
    %c0_2 = arith.constant 0 : index
    %1 = vector.load %arg3[%c0_1, %c0_2] : memref<8x256xf32, #tpu.memory_space<vmem>>, vector<8x256xf32>
    tpu.vector_store %arg3[%c0_1, %c0_2], %0 {strides = array<i32>} : memref<8x256xf32, #tpu.memory_space<vmem>>, vector<8x256xf32>,
    return
  }
  func.func @transform_0(%arg0: i32, %arg1: i32) -> (i32, i32) {
    %c0_i32 = arith.constant 0 : i32
    return %arg0, %arg1 : i32, i32
  }
  func.func @transform_1(%arg0: i32, %arg1: i32) -> (i32, i32) {
    %c0_i32 = arith.constant 0 : i32
    return %arg0, %arg1 : i32, i32
  }
}

</mosaic_0001>

<llo_original>
// kernel: net_forward.1
$region0: #{net_forward.1}
  #allocation0 [shape = 'u32[]', space=smem, size = 0x4, offset = 0x4, fixed_abs, tag = 'smem constant byte address 0x4 - core index']
  #allocation1 [shape = 'u32[144,128]{1,0:T(1,128)}', space=vmem, size = 0x12000, scoped, tag = 'internal scratch']
  %s0 = inlined_call_operand.vmem [shape: f32[8,256], index: 0, kind: input, shape index: {}, may-alias: {0,1}]
  %s1 = inlined_call_operand.vmem [shape: f32[8,256], index: 1, kind: output, shape index: {}, may-alias: {0,1}]
  %s2 = sld [smem:[#allocation0]]
  $region14: #{net_forward.1} parent=0
    _
  %s4 = ssub.s32 1, %s2
  %s5 = scalar_select 0, %s4, %s2
  // Predicated region
  $region2: #{net_forward.1} parent=0 // pred_check
    _
  $region3: #{net_forward.1} parent=0 // pred_check_branch
    %7 = sbr.rel (0) target = $region5
  $region4: #{net_forward.1} parent=0 // pred_region
    _
  $region5: #{net_forward.1} parent=0 // pred_fallthru
    _
  %v8 = vld [vmem:[%s0] sm:$0xff]
  %v9 = vld [vmem:[%s0 + $0x8] sm:$0xff]
  %10 = vst [vmem:[%s1] sm:$0xff] %v8
  %11 = vst [vmem:[%s1 + $0x8] sm:$0xff] %v9
  // Predicated region
  $region6: #{net_forward.1} parent=0 // pred_check
    _
  $region7: #{net_forward.1} parent=0 // pred_check_branch
    %13 = sbr.rel (0) target = $region9
  $region8: #{net_forward.1} parent=0 // pred_region
    _
  $region9: #{net_forward.1} parent=0 // pred_fallthru
    _
  // Predicated region
  $region10: #{net_forward.1} parent=0 // pred_check
    _
  $region11: #{net_forward.1} parent=0 // pred_check_branch
    %15 = sbr.rel (0) target = $region13
  $region12: #{net_forward.1} parent=0 // pred_region
    _
  $region13: #{net_forward.1} parent=0 // pred_fallthru
    _

</llo_original>
